<compile_context>
chip_gen: v5e
topology: v5e:2x2
jax: 0.10.0
libtpu: 0.0.40
codegen_flags: <defaults>
</compile_context>

<pallas_src>
import functools

import jax
import jax.numpy as jnp
from jax import lax
from jax.experimental import pallas as pl
from jax.experimental.pallas import tpu as pltpu


_LANES = 128
_ACC = 6  # sums of: fg_p, bg_p, fg_t, bg_t, fg_p*fg_t, bg_p*bg_t


def _tversky_sums_kernel(preds_ref, targets_ref, out_ref, *,
                         binary, padded, hw_total, tile_rows, tiles_per_split):
    t = pl.program_id(2)
    # Global spatial-tile index (split axis * tiles-per-split + inner tile).
    hw_idx = pl.program_id(1) * tiles_per_split + t

    # ---- init the resident per-(batch, split) accumulator block ------------
    @pl.when(t == 0)
    def _init():
        out_ref[...] = jnp.zeros_like(out_ref)

    # ---- class probabilities for this (tile_rows, 128) spatial tile --------
    blk = preds_ref[...].astype(jnp.float32)           # (1, C, tile_rows, 128)
    if binary:
        # 2-class softmax == sigmoid(z1 - z0) (exact identity).
        z0 = blk[0, 0]
        z1 = blk[0, 1]
        fg_p = pl.reciprocal(1.0 + jnp.exp(z0 - z1), approx=True)
        bg_p = 1.0 - fg_p
    else:
        logits = blk[0]                                 # (C, tile_rows, 128)
        m = jnp.max(logits, axis=0, keepdims=True)
        e = jnp.exp(logits - m)
        inv = pl.reciprocal(jnp.sum(e, axis=0), approx=True)
        fg_p = e[1] * inv
        bg_p = e[0] * inv

    labels = targets_ref[0]                             # (tile_rows, 128) int
    fg_t = (labels == 1).astype(jnp.float32)
    bg_t = (labels == 0).astype(jnp.float32)

    if padded:
        # Only the tiles that actually touch padding / OOB rows pay the mask.
        # jnp.where (select) is NaN/Inf-safe against garbage in edge blocks.
        def _mask(ops):
            base = hw_idx * (tile_rows * _LANES)
            row = lax.broadcasted_iota(jnp.int32, (tile_rows, _LANES), 0)
            col = lax.broadcasted_iota(jnp.int32, (tile_rows, _LANES), 1)
            valid = (base + row * _LANES + col) < hw_total
            return tuple(jnp.where(valid, o, 0.0) for o in ops)

        touches_pad = (hw_idx + 1) * (tile_rows * _LANES) > hw_total
        fg_p, bg_p, fg_t, bg_t = lax.cond(
            touches_pad, _mask, lambda ops: ops, (fg_p, bg_p, fg_t, bg_t))

    # ---- partially reduce each plane and accumulate (6 tiny (1,128) RMWs) --
    planes = (fg_p, bg_p, fg_t, bg_t, fg_p * fg_t, bg_p * bg_t)
    for i, plane in enumerate(planes):
        out_ref[0, 0, i:i + 1, :] += jnp.sum(plane, axis=0, keepdims=True)


def asymmetric_tversky_loss(preds, targets, *, delta=0.7, smooth=1e-6,
                            class_weights=None, max_tile_rows=512,
                            spatial_splits=2):
    """Pallas implementation of AsymmetricTverskyLoss.forward.

    preds:   (B, C, H, W) logits (NCHW, like PyTorch); f32 or bf16.
    targets: (B, H, W) integer labels (int8/int32/...).
    returns: (B,) float32 per-batch loss.
    """
    B, C, H, W = preds.shape
    assert C >= 2, "AsymmetricTverskyLoss needs at least 2 channels"
    HW = H * W
    rows = pl.cdiv(HW, _LANES)

    # Cap the tile so the double-buffered input working set stays a few MiB
    # (portable across v5e/v6e 128 MiB and v7x 64 MiB VMEM without raising the
    # scoped-VMEM limit).
    bytes_per_row = _LANES * (C * preds.dtype.itemsize + targets.dtype.itemsize)
    cap = max(8, (((8 << 20) // (2 * bytes_per_row)) // 8) * 8)
    budget = max(8, (min(int(max_tile_rows), cap) // 8) * 8)

    tile_rows = rows if rows <= budget else budget       # multiple of 8 if tiled
    total_tiles = pl.cdiv(rows, tile_rows)

    # Spatial split: extra parallel grid axis so v7x megacore has work at B=1.
    S = max(1, min(int(spatial_splits), total_tiles))
    T = pl.cdiv(total_tiles, S)

    # Minimal pad: only up to a multiple of 128 (needed for the lane-dense
    # reshape).  Tile raggedness is handled by Pallas edge blocks + mask.
    preds_flat = preds.reshape(B, C, HW)
    targets_flat = targets.reshape(B, HW)
    hw_128 = rows * _LANES
    if hw_128 != HW:
        pad = hw_128 - HW
        preds_flat = jnp.pad(preds_flat, ((0, 0), (0, 0), (0, pad)))
        targets_flat = jnp.pad(targets_flat, ((0, 0), (0, pad)))
    preds_r = preds_flat.reshape(B, C, rows, _LANES)
    targets_r = targets_flat.reshape(B, rows, _LANES)

    padded = (S * T * tile_rows * _LANES) != HW

    kernel = functools.partial(
        _tversky_sums_kernel, binary=(C == 2), padded=padded,
        hw_total=HW, tile_rows=tile_rows, tiles_per_split=T)

    last = total_tiles - 1  # clamp so over-shooting split tiles re-read (and
                            # fully mask) the last block instead of going OOB.

    def pred_idx(b, s, t):
        return (b, 0, jnp.minimum(s * T + t, last), 0)

    def tgt_idx(b, s, t):
        return (b, jnp.minimum(s * T + t, last), 0)

    sums = pl.pallas_call(
        kernel,
        out_shape=jax.ShapeDtypeStruct((B, S, _ACC, _LANES), jnp.float32),
        grid=(B, S, T),
        in_specs=[
            pl.BlockSpec((1, C, tile_rows, _LANES), pred_idx),
            pl.BlockSpec((1, tile_rows, _LANES), tgt_idx),
        ],
        out_specs=pl.BlockSpec((1, 1, _ACC, _LANES),
                               lambda b, s, t: (b, s, 0, 0)),
        compiler_params=pltpu.CompilerParams(
            dimension_semantics=("parallel", "parallel", "arbitrary")),
    )(preds_r, targets_r)

    # ---- tiny O(B) epilogue: combine splits, Tversky indices, weighting ----
    tot = jnp.sum(sums, axis=(1, 3))                     # (B, 6)
    s_fgp, s_bgp, s_fgt, s_bgt, tp_fg, tp_bg = (tot[:, i] for i in range(_ACC))
    fn_fg = s_fgt - tp_fg        # == sum(fg_t * (1 - fg_p))
    fp_fg = s_fgp - tp_fg        # == sum((1 - fg_t) * fg_p)
    fn_bg = s_bgt - tp_bg
    fp_bg = s_bgp - tp_bg
    tv_fg = (tp_fg + smooth) / (
        tp_fg + delta * fn_fg + (1.0 - delta) * fp_fg + smooth)
    tv_bg = (tp_bg + smooth) / (
        tp_bg + delta * fn_bg + (1.0 - delta) * fp_bg + smooth)
    if class_weights is not None:
        return (1.0 - tv_bg) * class_weights[0] + (1.0 - tv_fg) * class_weights[1]
    return 1.0 - tv_fg


def _reference_loss(preds, targets, *, delta=0.7, smooth=1e-6,
                    class_weights=None):
    """Pure-JAX reference mirroring the PyTorch forward, for verification."""
    p = jax.nn.softmax(preds.astype(jnp.float32), axis=1)
    fg_p = p[:, 1, :, :]
    bg_p = p[:, 0, :, :]
    fg_t = (targets == 1).astype(jnp.float32)
    bg_t = (targets == 0).astype(jnp.float32)
    tp_fg = jnp.sum(fg_p * fg_t, axis=(1, 2))
    fn_fg = jnp.sum(fg_t * (1 - fg_p), axis=(1, 2))
    fp_fg = jnp.sum((1 - fg_t) * fg_p, axis=(1, 2))
    tp_bg = jnp.sum(bg_p * bg_t, axis=(1, 2))
    fn_bg = jnp.sum(bg_t * (1 - bg_p), axis=(1, 2))
    fp_bg = jnp.sum((1 - bg_t) * bg_p, axis=(1, 2))
    tv_fg = (tp_fg + smooth) / (tp_fg + delta * fn_fg + (1 - delta) * fp_fg + smooth)
    tv_bg = (tp_bg + smooth) / (tp_bg + delta * fn_bg + (1 - delta) * fp_bg + smooth)
    if class_weights is not None:
        return (1 - tv_bg) * class_weights[0] + (1 - tv_fg) * class_weights[1]
    return 1 - tv_fg


if __name__ == "__main__":
    delta = 0.7
    smooth = 1e-6
    tol = dict(atol=5e-3, rtol=5e-3)   # approx-reciprocal adds ~1e-4 rel error
    key = jax.random.PRNGKey(0)
    k1, k2, k3, k4, k5, k6 = jax.random.split(key, 6)

    # Test 1: binary (C=2), class-weighted, f32/int32, no padding, no split.
    B, C, H, W = 2, 2, 16, 16
    class_weights = (0.3, 0.7)
    preds = jax.random.normal(k1, (B, C, H, W), dtype=jnp.float32)
    targets = jax.random.randint(k2, (B, H, W), 0, 2, dtype=jnp.int32)
    loss = asymmetric_tversky_loss(
        preds, targets, delta=delta, smooth=smooth, class_weights=class_weights)
    loss = jax.block_until_ready(loss)
    ref = _reference_loss(
        preds, targets, delta=delta, smooth=smooth, class_weights=class_weights)
    assert loss.shape == (B,)
    assert jnp.allclose(loss, ref, **tol), (loss, ref)

    # Test 2: C=3 (general softmax path), unweighted, HW not a multiple of 128
    # (exercises the minimal 128-pad + NaN-safe in-kernel mask), labels > 1.
    B2, C2, H2, W2 = 2, 3, 20, 20
    preds2 = jax.random.normal(k3, (B2, C2, H2, W2), dtype=jnp.float32)
    targets2 = jax.random.randint(k4, (B2, H2, W2), 0, 3, dtype=jnp.int32)
    loss2 = asymmetric_tversky_loss(preds2, targets2, delta=delta, smooth=smooth)
    loss2 = jax.block_until_ready(loss2)
    ref2 = _reference_loss(preds2, targets2, delta=delta, smooth=smooth)
    assert loss2.shape == (B2,)
    assert jnp.allclose(loss2, ref2, **tol), (loss2, ref2)

    # Test 3: B=1, bf16 logits + int8 labels (reduced HBM bytes/pixel),
    # small max_tile_rows to force multiple spatial tiles, the 2-way spatial
    # split (v7x megacore path), a ragged edge block and a clamped duplicate
    # tile — all must be masked out correctly.
    B3, C3, H3, W3 = 1, 2, 96, 96
    preds3 = jax.random.normal(k5, (B3, C3, H3, W3), dtype=jnp.bfloat16)
    targets3 = jax.random.randint(k6, (B3, H3, W3), 0, 2,
                                  dtype=jnp.int32).astype(jnp.int8)
    loss3 = asymmetric_tversky_loss(
        preds3, targets3, delta=delta, smooth=smooth,
        class_weights=class_weights, max_tile_rows=32, spatial_splits=2)
    loss3 = jax.block_until_ready(loss3)
    ref3 = _reference_loss(
        preds3, targets3, delta=delta, smooth=smooth, class_weights=class_weights)
    assert loss3.shape == (B3,)
    assert jnp.allclose(loss3, ref3, **tol), (loss3, ref3)

    print("KERNEL_OK")
</pallas_src>

<mosaic_0001>
module attributes {stable_mosaic.version = 11 : i64} {
  func.func @_tversky_sums_kernel(%arg0: i32, %arg1: i32, %arg2: i32, %arg3: memref<1x2x2x128xf32, #tpu.memory_space<vmem>>, %arg4: memref<1x2x128xi32, #tpu.memory_space<vmem>>, %arg5: memref<1x1x6x128xf32, #tpu.memory_space<vmem>>) attributes {dimension_semantics = [#tpu.dimension_semantics<parallel>, #tpu.dimension_semantics<parallel>, #tpu.dimension_semantics<arbitrary>], iteration_bounds = array<i64: 2, 1, 1>, scalar_prefetch = 0 : i64, scratch_operands = 0 : i64, tpu.core_type = #tpu.core_type<tc>, window_params = [{transform_indices = @transform_0, window_bounds = array<i64: 1, 2, 2, 128>}, {transform_indices = @transform_1, window_bounds = array<i64: 1, 2, 128>}, {transform_indices = @transform_2, window_bounds = array<i64: 1, 1, 6, 128>}]} {
    %c0_i32 = arith.constant 0 : i32
    %0 = arith.cmpi eq, %arg2, %c0_i32 : i32
    %1 = arith.extui %0 : i1 to i32
    %c0_i32_0 = arith.constant 0 : i32
    %2 = arith.cmpi ne, %1, %c0_i32_0 : i32
    scf.if %2 {
      %cst_58 = arith.constant 0.000000e+00 : f32
      %75 = vector.broadcast %cst_58 : f32 to vector<1x1x6x128xf32>
      %c0_59 = arith.constant 0 : index
      %c0_60 = arith.constant 0 : index
      %c0_61 = arith.constant 0 : index
      %c0_62 = arith.constant 0 : index
      %76 = vector.load %arg5[%c0_59, %c0_60, %c0_61, %c0_62] : memref<1x1x6x128xf32, #tpu.memory_space<vmem>>, vector<1x1x6x128xf32>
      tpu.vector_store %arg5[%c0_59, %c0_60, %c0_61, %c0_62], %75 {strides = array<i32>} : memref<1x1x6x128xf32, #tpu.memory_space<vmem>>, vector<1x1x6x128xf32>,
    } else {
    }
    %c0 = arith.constant 0 : index
    %c0_1 = arith.constant 0 : index
    %c0_2 = arith.constant 0 : index
    %c0_3 = arith.constant 0 : index
    %3 = vector.load %arg3[%c0, %c0_1, %c0_2, %c0_3] : memref<1x2x2x128xf32, #tpu.memory_space<vmem>>, vector<1x2x2x128xf32>
    %4 = vector.extract_strided_slice %3 {offsets = [0, 0, 0, 0], sizes = [1, 1, 2, 128], strides = [1, 1, 1, 1]} : vector<1x2x2x128xf32> to vector<1x1x2x128xf32>
    %5 = vector.shape_cast %4 : vector<1x1x2x128xf32> to vector<2x128xf32>
    %6 = vector.extract_strided_slice %3 {offsets = [0, 1, 0, 0], sizes = [1, 1, 2, 128], strides = [1, 1, 1, 1]} : vector<1x2x2x128xf32> to vector<1x1x2x128xf32>
    %7 = vector.shape_cast %6 : vector<1x1x2x128xf32> to vector<2x128xf32>
    %8 = arith.subf %5, %7 : vector<2x128xf32>
    %9 = math.exp %8 : vector<2x128xf32>
    %cst = arith.constant 1.000000e+00 : f32
    %10 = vector.broadcast %cst : f32 to vector<2x128xf32>
    %11 = arith.addf %10, %9 : vector<2x128xf32>
    %12 = tpu.reciprocal %11 {approx = true} : vector<2x128xf32> -> vector<2x128xf32>
    %cst_4 = arith.constant 1.000000e+00 : f32
    %13 = vector.broadcast %cst_4 : f32 to vector<2x128xf32>
    %14 = arith.subf %13, %12 : vector<2x128xf32>
    %c0_5 = arith.constant 0 : index
    %c0_6 = arith.constant 0 : index
    %c0_7 = arith.constant 0 : index
    %15 = vector.load %arg4[%c0_5, %c0_6, %c0_7] : memref<1x2x128xi32, #tpu.memory_space<vmem>>, vector<1x2x128xi32>
    %16 = vector.shape_cast %15 : vector<1x2x128xi32> to vector<2x128xi32>
    %c1_i32 = arith.constant 1 : i32
    %17 = vector.broadcast %c1_i32 : i32 to vector<2x128xi32>
    %18 = arith.cmpi eq, %16, %17 : vector<2x128xi32>
    %19 = arith.extui %18 : vector<2x128xi1> to vector<2x128xi32>
    %20 = arith.sitofp %19 : vector<2x128xi32> to vector<2x128xf32>
    %c0_i32_8 = arith.constant 0 : i32
    %21 = vector.broadcast %c0_i32_8 : i32 to vector<2x128xi32>
    %22 = arith.cmpi eq, %16, %21 : vector<2x128xi32>
    %23 = arith.extui %22 : vector<2x128xi1> to vector<2x128xi32>
    %24 = arith.sitofp %23 : vector<2x128xi32> to vector<2x128xf32>
    %25 = arith.mulf %12, %20 : vector<2x128xf32>
    %26 = arith.mulf %14, %24 : vector<2x128xf32>
    %c0_9 = arith.constant 0 : index
    %c0_10 = arith.constant 0 : index
    %c0_11 = arith.constant 0 : index
    %c0_12 = arith.constant 0 : index
    %27 = vector.load %arg5[%c0_9, %c0_10, %c0_11, %c0_12] : memref<1x1x6x128xf32, #tpu.memory_space<vmem>>, vector<1x1x1x128xf32>
    %28 = vector.shape_cast %27 : vector<1x1x1x128xf32> to vector<1x128xf32>
    %cst_13 = arith.constant dense<0.000000e+00> : vector<128xf32>
    %29 = vector.multi_reduction <add>, %12, %cst_13 [0] : vector<2x128xf32> to vector<128xf32>
    %30 = vector.shape_cast %29 : vector<128xf32> to vector<1x128xf32>
    %31 = arith.addf %28, %30 : vector<1x128xf32>
    %c0_14 = arith.constant 0 : index
    %c0_15 = arith.constant 0 : index
    %c0_16 = arith.constant 0 : index
    %c0_17 = arith.constant 0 : index
    %32 = vector.load %arg5[%c0_14, %c0_15, %c0_16, %c0_17] : memref<1x1x6x128xf32, #tpu.memory_space<vmem>>, vector<1x1x1x128xf32>
    %33 = vector.shape_cast %32 : vector<1x1x1x128xf32> to vector<1x128xf32>
    %34 = vector.shape_cast %31 : vector<1x128xf32> to vector<1x1x1x128xf32>
    tpu.vector_store %arg5[%c0_14, %c0_15, %c0_16, %c0_17], %34 {strides = array<i32>} : memref<1x1x6x128xf32, #tpu.memory_space<vmem>>, vector<1x1x1x128xf32>,
    %c0_18 = arith.constant 0 : index
    %c0_19 = arith.constant 0 : index
    %c1 = arith.constant 1 : index
    %c0_20 = arith.constant 0 : index
    %35 = vector.load %arg5[%c0_18, %c0_19, %c1, %c0_20] : memref<1x1x6x128xf32, #tpu.memory_space<vmem>>, vector<1x1x1x128xf32>
    %36 = vector.shape_cast %35 : vector<1x1x1x128xf32> to vector<1x128xf32>
    %cst_21 = arith.constant dense<0.000000e+00> : vector<128xf32>
    %37 = vector.multi_reduction <add>, %14, %cst_21 [0] : vector<2x128xf32> to vector<128xf32>
    %38 = vector.shape_cast %37 : vector<128xf32> to vector<1x128xf32>
    %39 = arith.addf %36, %38 : vector<1x128xf32>
    %c0_22 = arith.constant 0 : index
    %c0_23 = arith.constant 0 : index
    %c1_24 = arith.constant 1 : index
    %c0_25 = arith.constant 0 : index
    %40 = vector.load %arg5[%c0_22, %c0_23, %c1_24, %c0_25] : memref<1x1x6x128xf32, #tpu.memory_space<vmem>>, vector<1x1x1x128xf32>
    %41 = vector.shape_cast %40 : vector<1x1x1x128xf32> to vector<1x128xf32>
    %42 = vector.shape_cast %39 : vector<1x128xf32> to vector<1x1x1x128xf32>
    tpu.vector_store %arg5[%c0_22, %c0_23, %c1_24, %c0_25], %42 {strides = array<i32>} : memref<1x1x6x128xf32, #tpu.memory_space<vmem>>, vector<1x1x1x128xf32>,
    %c0_26 = arith.constant 0 : index
    %c0_27 = arith.constant 0 : index
    %c2 = arith.constant 2 : index
    %c0_28 = arith.constant 0 : index
    %43 = vector.load %arg5[%c0_26, %c0_27, %c2, %c0_28] : memref<1x1x6x128xf32, #tpu.memory_space<vmem>>, vector<1x1x1x128xf32>
    %44 = vector.shape_cast %43 : vector<1x1x1x128xf32> to vector<1x128xf32>
    %cst_29 = arith.constant dense<0.000000e+00> : vector<128xf32>
    %45 = vector.multi_reduction <add>, %20, %cst_29 [0] : vector<2x128xf32> to vector<128xf32>
    %46 = vector.shape_cast %45 : vector<128xf32> to vector<1x128xf32>
    %47 = arith.addf %44, %46 : vector<1x128xf32>
    %c0_30 = arith.constant 0 : index
    %c0_31 = arith.constant 0 : index
    %c2_32 = arith.constant 2 : index
    %c0_33 = arith.constant 0 : index
    %48 = vector.load %arg5[%c0_30, %c0_31, %c2_32, %c0_33] : memref<1x1x6x128xf32, #tpu.memory_space<vmem>>, vector<1x1x1x128xf32>
    %49 = vector.shape_cast %48 : vector<1x1x1x128xf32> to vector<1x128xf32>
    %50 = vector.shape_cast %47 : vector<1x128xf32> to vector<1x1x1x128xf32>
    tpu.vector_store %arg5[%c0_30, %c0_31, %c2_32, %c0_33], %50 {strides = array<i32>} : memref<1x1x6x128xf32, #tpu.memory_space<vmem>>, vector<1x1x1x128xf32>,
    %c0_34 = arith.constant 0 : index
    %c0_35 = arith.constant 0 : index
    %c3 = arith.constant 3 : index
    %c0_36 = arith.constant 0 : index
    %51 = vector.load %arg5[%c0_34, %c0_35, %c3, %c0_36] : memref<1x1x6x128xf32, #tpu.memory_space<vmem>>, vector<1x1x1x128xf32>
    %52 = vector.shape_cast %51 : vector<1x1x1x128xf32> to vector<1x128xf32>
    %cst_37 = arith.constant dense<0.000000e+00> : vector<128xf32>
    %53 = vector.multi_reduction <add>, %24, %cst_37 [0] : vector<2x128xf32> to vector<128xf32>
    %54 = vector.shape_cast %53 : vector<128xf32> to vector<1x128xf32>
    %55 = arith.addf %52, %54 : vector<1x128xf32>
    %c0_38 = arith.constant 0 : index
    %c0_39 = arith.constant 0 : index
    %c3_40 = arith.constant 3 : index
    %c0_41 = arith.constant 0 : index
    %56 = vector.load %arg5[%c0_38, %c0_39, %c3_40, %c0_41] : memref<1x1x6x128xf32, #tpu.memory_space<vmem>>, vector<1x1x1x128xf32>
    %57 = vector.shape_cast %56 : vector<1x1x1x128xf32> to vector<1x128xf32>
    %58 = vector.shape_cast %55 : vector<1x128xf32> to vector<1x1x1x128xf32>
    tpu.vector_store %arg5[%c0_38, %c0_39, %c3_40, %c0_41], %58 {strides = array<i32>} : memref<1x1x6x128xf32, #tpu.memory_space<vmem>>, vector<1x1x1x128xf32>,
    %c0_42 = arith.constant 0 : index
    %c0_43 = arith.constant 0 : index
    %c4 = arith.constant 4 : index
    %c0_44 = arith.constant 0 : index
    %59 = vector.load %arg5[%c0_42, %c0_43, %c4, %c0_44] : memref<1x1x6x128xf32, #tpu.memory_space<vmem>>, vector<1x1x1x128xf32>
    %60 = vector.shape_cast %59 : vector<1x1x1x128xf32> to vector<1x128xf32>
    %cst_45 = arith.constant dense<0.000000e+00> : vector<128xf32>
    %61 = vector.multi_reduction <add>, %25, %cst_45 [0] : vector<2x128xf32> to vector<128xf32>
    %62 = vector.shape_cast %61 : vector<128xf32> to vector<1x128xf32>
    %63 = arith.addf %60, %62 : vector<1x128xf32>
    %c0_46 = arith.constant 0 : index
    %c0_47 = arith.constant 0 : index
    %c4_48 = arith.constant 4 : index
    %c0_49 = arith.constant 0 : index
    %64 = vector.load %arg5[%c0_46, %c0_47, %c4_48, %c0_49] : memref<1x1x6x128xf32, #tpu.memory_space<vmem>>, vector<1x1x1x128xf32>
    %65 = vector.shape_cast %64 : vector<1x1x1x128xf32> to vector<1x128xf32>
    %66 = vector.shape_cast %63 : vector<1x128xf32> to vector<1x1x1x128xf32>
    tpu.vector_store %arg5[%c0_46, %c0_47, %c4_48, %c0_49], %66 {strides = array<i32>} : memref<1x1x6x128xf32, #tpu.memory_space<vmem>>, vector<1x1x1x128xf32>,
    %c0_50 = arith.constant 0 : index
    %c0_51 = arith.constant 0 : index
    %c5 = arith.constant 5 : index
    %c0_52 = arith.constant 0 : index
    %67 = vector.load %arg5[%c0_50, %c0_51, %c5, %c0_52] : memref<1x1x6x128xf32, #tpu.memory_space<vmem>>, vector<1x1x1x128xf32>
    %68 = vector.shape_cast %67 : vector<1x1x1x128xf32> to vector<1x128xf32>
    %cst_53 = arith.constant dense<0.000000e+00> : vector<128xf32>
    %69 = vector.multi_reduction <add>, %26, %cst_53 [0] : vector<2x128xf32> to vector<128xf32>
    %70 = vector.shape_cast %69 : vector<128xf32> to vector<1x128xf32>
    %71 = arith.addf %68, %70 : vector<1x128xf32>
    %c0_54 = arith.constant 0 : index
    %c0_55 = arith.constant 0 : index
    %c5_56 = arith.constant 5 : index
    %c0_57 = arith.constant 0 : index
    %72 = vector.load %arg5[%c0_54, %c0_55, %c5_56, %c0_57] : memref<1x1x6x128xf32, #tpu.memory_space<vmem>>, vector<1x1x1x128xf32>
    %73 = vector.shape_cast %72 : vector<1x1x1x128xf32> to vector<1x128xf32>
    %74 = vector.shape_cast %71 : vector<1x128xf32> to vector<1x1x1x128xf32>
    tpu.vector_store %arg5[%c0_54, %c0_55, %c5_56, %c0_57], %74 {strides = array<i32>} : memref<1x1x6x128xf32, #tpu.memory_space<vmem>>, vector<1x1x1x128xf32>,
    return
  }
  func.func @transform_0(%arg0: i32, %arg1: i32, %arg2: i32) -> (i32, i32, i32, i32) {
    %c1_i32 = arith.constant 1 : i32
    %0 = arith.muli %arg1, %c1_i32 : i32
    %1 = arith.addi %0, %arg2 : i32
    %c0_i32 = arith.constant 0 : i32
    %2 = arith.minsi %1, %c0_i32 : i32
    %c0_i32_0 = arith.constant 0 : i32
    %c0_i32_1 = arith.constant 0 : i32
    %c0_i32_2 = arith.constant 0 : i32
    return %arg0, %c0_i32_0, %2, %c0_i32_1 : i32, i32, i32, i32
  }
  func.func @transform_1(%arg0: i32, %arg1: i32, %arg2: i32) -> (i32, i32, i32) {
    %c1_i32 = arith.constant 1 : i32
    %0 = arith.muli %arg1, %c1_i32 : i32
    %1 = arith.addi %0, %arg2 : i32
    %c0_i32 = arith.constant 0 : i32
    %2 = arith.minsi %1, %c0_i32 : i32
    %c0_i32_0 = arith.constant 0 : i32
    %c0_i32_1 = arith.constant 0 : i32
    return %arg0, %2, %c0_i32_0 : i32, i32, i32
  }
  func.func @transform_2(%arg0: i32, %arg1: i32, %arg2: i32) -> (i32, i32, i32, i32) {
    %c0_i32 = arith.constant 0 : i32
    %c0_i32_0 = arith.constant 0 : i32
    %c0_i32_1 = arith.constant 0 : i32
    return %arg0, %arg1, %c0_i32, %c0_i32_0 : i32, i32, i32, i32
  }
}

</mosaic_0001>

<llo_original>
// kernel: tpu_custom_call.1
$region0: #{tpu_custom_call.1}
  #allocation0 [shape = 'u32[]', space=smem, size = 0x4, offset = 0x4, fixed_abs, tag = 'smem constant byte address 0x4 - core index']
  #allocation1 [shape = 'u32[72,128]{1,0:T(1,128)}', space=vmem, size = 0x9000, scoped, tag = 'internal scratch']
  %s0 = inlined_call_operand.hbm [shape: f32[2,2,2,128], index: 0, kind: input, shape index: {}]
  %s1 = inlined_call_operand.hbm [shape: s32[2,2,128], index: 1, kind: input, shape index: {}]
  %s2 = inlined_call_operand.vmem [shape: f32[2,1,6,128], index: 2, kind: output, shape index: {}]
  %s3 = sld [smem:[#allocation0]]
  $region53: #{tpu_custom_call.1} parent=0
    _
  %s5 = ssub.s32 1, %s3
  %s6 = scalar_select 0, %s5, %s3
  $region1: #{tpu_custom_call.1} parent=0
    #allocation2 [shape = 'u8[4096]{0}', space=vmem, size = 0x1000, scoped, tag = 'input window, operand 0']
    #allocation3 [shape = 's32[2]{0}', space=sflag, size = 0x8, scoped, tag = 'scoped memory for tpu_custom_call.1']
    #allocation4 [shape = 'u8[2048]{0}', space=vmem, size = 0x800, scoped, tag = 'input window, operand 1']
    #allocation5 [shape = 's32[2]{0}', space=sflag, size = 0x8, scoped, tag = 'scoped memory for tpu_custom_call.1']
    %7 = vsyncpa [#allocation3], 0
    %s8 = scalar_lea.sflag [#allocation3], 1
    %9 = vsyncpa %s8, 0
    %10 = vsyncpa [#allocation5], 0
    %s11 = scalar_lea.sflag [#allocation5], 1
    %12 = vsyncpa %s11, 0
    loop: start=0, step=1, limit=4
    $region2: #{tpu_custom_call.1} parent=1 // loop_pre_header
      _
    $region3: #{tpu_custom_call.1} parent=1 // loop_header
      %s14 = sphi 0, %s18
      %p15 = scmp.ge.s32.totalorder %s14, 4
      %s21 = sphi 0, %s40
      %s22 = sphi 0, %s36
      %s23 = sphi 0, %s32
      %s24 = sphi 0, %s21
      %s25 = sphi 0, %s22
      %s26 = sphi 0, %s23
      %s27 = sphi 0, %s24
      %s28 = sphi 0, %s25
      %s29 = sphi 0, %s26
      %s51 = sphi 0, %s53
      %s54 = sphi 0, %s51
      %s55 = sphi 0, %s54
      %s71 = sphi 0, %s55
      %s85 = sphi 0, %s87
      %s88 = sphi 0, %s85
      %s89 = sphi 0, %s88
      %s105 = sphi 0, %s89
      %s113 = sphi 0, %s115
      %s116 = sphi 0, %s113
      %s117 = sphi 0, %s116
      %s133 = sphi 0, %s117
    $region4: #{tpu_custom_call.1} parent=1 // loop_header_branch
      %17 = sbr.rel (%p15) target = $region8
    $region5: #{tpu_custom_call.1} parent=1 // loop_body
      %s19 = ssub.s32 %s14, 1
      %s20 = ssub.s32 %s14, 2
      %s30 = sadd.s32 1, %s23
      %p31 = scmp.ge.s32.totalorder %s30, 1
      %s32 = scalar_select %p31, 0, %s30
      %s33 = sadd.s32 1, %s22
      %s34 = scalar_select %p31, %s33, %s22
      %p35 = scmp.ge.s32.totalorder %s34, 1
      %s36 = scalar_select %p35, 0, %s34
      %s37 = sadd.s32 1, %s21
      %s38 = scalar_select %p35, %s37, %s21
      %p39 = scmp.ge.s32.totalorder %s38, 2
      %s40 = scalar_select %p39, 0, %s38
      %s41 = sadd.s32 %s22, %s23
      %p42 = scmp.lt.s32.totalorder %s41, 0
      %s43 = scalar_select %p42, %s41, 0
      %s44 = sadd.s32 %s36, %s32
      %p45 = scmp.lt.s32.totalorder %s44, 0
      %s46 = scalar_select %p45, %s44, 0
      %s47 = ssub.s32 %s21, %s40
      %s48 = ssub.s32 %s43, %s46
      %s49 = sor.u32 %s47, %s48
      %p50 = scmp.eq.s32.totalorder %s49, 0
      %s52 = sadd.s32 %s51, 1
      %s53 = scalar_select %p50, %s51, %s52
      %p56 = pneg %p50
      %p57 = scmp.eq.s32.totalorder %s14, 1
      %p58 = por %p56, %p57
      %p59 = scmp.ne.s32.totalorder %s51, %s54
      %p60 = scmp.eq.s32.totalorder %s14, 0
      %p61 = por %p59, %p60
      %p62 = scmp.ne.s32.totalorder %s51, %s54
      %p63 = scmp.eq.s32.totalorder %s19, 1
      %p64 = por %p62, %p63
      %p65 = scmp.ne.s32.totalorder %s54, %s55
      %p66 = scmp.eq.s32.totalorder %s19, 0
      %p67 = por %p65, %p66
      %p68 = scmp.ne.s32.totalorder %s54, %s55
      %p69 = scmp.eq.s32.totalorder %s20, 1
      %p70 = por %p68, %p69
      %p72 = scmp.ne.s32.totalorder %s55, %s71
      %p73 = scmp.eq.s32.totalorder %s20, 0
      %p74 = por %p72, %p73
      %s75 = sadd.s32 %s22, %s23
      %p76 = scmp.lt.s32.totalorder %s75, 0
      %s77 = scalar_select %p76, %s75, 0
      %s78 = sadd.s32 %s36, %s32
      %p79 = scmp.lt.s32.totalorder %s78, 0
      %s80 = scalar_select %p79, %s78, 0
      %s81 = ssub.s32 %s21, %s40
      %s82 = ssub.s32 %s77, %s80
      %s83 = sor.u32 %s81, %s82
      %p84 = scmp.eq.s32.totalorder %s83, 0
      %s86 = sadd.s32 %s85, 1
      %s87 = scalar_select %p84, %s85, %s86
      %p90 = pneg %p84
      %p91 = scmp.eq.s32.totalorder %s14, 1
      %p92 = por %p90, %p91
      %p93 = scmp.ne.s32.totalorder %s85, %s88
      %p94 = scmp.eq.s32.totalorder %s14, 0
      %p95 = por %p93, %p94
      %p96 = scmp.ne.s32.totalorder %s85, %s88
      %p97 = scmp.eq.s32.totalorder %s19, 1
      %p98 = por %p96, %p97
      %p99 = scmp.ne.s32.totalorder %s88, %s89
      %p100 = scmp.eq.s32.totalorder %s19, 0
      %p101 = por %p99, %p100
      %p102 = scmp.ne.s32.totalorder %s88, %s89
      %p103 = scmp.eq.s32.totalorder %s20, 1
      %p104 = por %p102, %p103
      %p106 = scmp.ne.s32.totalorder %s89, %s105
      %p107 = scmp.eq.s32.totalorder %s20, 0
      %p108 = por %p106, %p107
      %s109 = ssub.s32 %s21, %s40
      %s110 = ssub.s32 %s22, %s36
      %s111 = sor.u32 %s109, %s110
      %p112 = scmp.eq.s32.totalorder %s111, 0
      %s114 = sadd.s32 %s113, 1
      %s115 = scalar_select %p112, %s113, %s114
      %p118 = pneg %p112
      %p119 = scmp.eq.s32.totalorder %s14, 1
      %p120 = por %p118, %p119
      %p121 = scmp.ne.s32.totalorder %s113, %s116
      %p122 = scmp.eq.s32.totalorder %s14, 0
      %p123 = por %p121, %p122
      %p124 = scmp.ne.s32.totalorder %s113, %s116
      %p125 = scmp.eq.s32.totalorder %s19, 1
      %p126 = por %p124, %p125
      %p127 = scmp.ne.s32.totalorder %s116, %s117
      %p128 = scmp.eq.s32.totalorder %s19, 0
      %p129 = por %p127, %p128
      %p130 = scmp.ne.s32.totalorder %s116, %s117
      %p131 = scmp.eq.s32.totalorder %s20, 1
      %p132 = por %p130, %p131
      %p134 = scmp.ne.s32.totalorder %s117, %s133
      %p135 = scmp.eq.s32.totalorder %s20, 0
      %p136 = por %p134, %p135
      %p137 = scmp.le.s32.totalorder 1, %s14
      %p138 = scmp.lt.s32.totalorder %s14, 3
      %p139 = pnand %p137, %p138
      %p140 = pneg %p139
      // Predicated region
      $region9: #{tpu_custom_call.1} parent=5 // pred_check
        _
      $region10: #{tpu_custom_call.1} parent=5 // pred_check_branch
        %142 = sbr.rel (%p139) target = $region12
      $region11: #{tpu_custom_call.1} parent=5 // pred_region
        %s143 = ssub.s32 %s14, 1
      $region12: #{tpu_custom_call.1} parent=5 // pred_fallthru
        _
      %p144 = scmp.lt.s32.totalorder %s14, 2
      // Predicated region
      $region13: #{tpu_custom_call.1} parent=5 // pred_check
        %p145 = pneg %p144
      $region14: #{tpu_custom_call.1} parent=5 // pred_check_branch
        %147 = sbr.rel (%p145) target = $region16
      $region15: #{tpu_custom_call.1} parent=5 // pred_region
        // Predicated region
        $region17: #{tpu_custom_call.1} parent=15 // pred_check
          %p148 = pneg %p61
        $region18: #{tpu_custom_call.1} parent=15 // pred_check_branch
          %150 = sbr.rel (%p148) target = $region20
        $region19: #{tpu_custom_call.1} parent=15 // pred_region
          %s151 = sand.u32 %s51, 1
          %s152 = scalar_lea.sflag [#allocation3], %s151
          %s153 = sand.u32 %s51, 1
          %s154 = smul.addr %s153, 4
          %s155 = scalar_lea.vmem [#allocation2], %s154
          %s156 = sadd.s32 %s22, %s23
          %p157 = scmp.lt.s32.totalorder %s156, 0
          %s158 = scalar_select %p157, %s156, 0
          %160 = vsyncadd %s152, 0
          %s161 = smul.addr %s21, 2
          %s162 = sadd.s32 %s158, %s161
          %s163 = smul.addr %s162, 2
          %s164 = scalar_lea.hbm %s0, %s163
          %s165 = sshll.u32 %s164, 4
          %s166 = int_to_ptr.hbm [resolvable:$true] %s165
          %s167 = sshll.u32 %s155, 4
          %s168 = int_to_ptr.vmem [resolvable:$true] %s167
          %173 = dma.hbm_to_vmem [thread:$0]  %s166, 64, %s168, %s152, 32, 32, 2
        $region20: #{tpu_custom_call.1} parent=15 // pred_fallthru
          _
        // Predicated region
        $region21: #{tpu_custom_call.1} parent=15 // pred_check
          %p174 = pneg %p95
        $region22: #{tpu_custom_call.1} parent=15 // pred_check_branch
          %176 = sbr.rel (%p174) target = $region24
        $region23: #{tpu_custom_call.1} parent=15 // pred_region
          %s177 = sand.u32 %s85, 1
          %s178 = scalar_lea.sflag [#allocation5], %s177
          %s179 = sand.u32 %s85, 1
          %s180 = smul.addr %s179, 2
          %s181 = scalar_lea.vmem [#allocation4], %s180
          %s182 = sadd.s32 %s22, %s23
          %p183 = scmp.lt.s32.totalorder %s182, 0
          %s184 = scalar_select %p183, %s182, 0
          %186 = vsyncadd %s178, 0
          %s187 = sadd.s32 %s184, %s21
          %s188 = smul.addr %s187, 2
          %s189 = scalar_lea.hbm %s1, %s188
          %s191 = sshll.u32 %s189, 4
          %s192 = int_to_ptr.hbm [resolvable:$true] %s191
          %s193 = sshll.u32 %s181, 4
          %s194 = int_to_ptr.vmem [resolvable:$true] %s193
          %196 = dma.hbm_to_vmem [thread:$0]  %s192, 32, %s194, %s178
        $region24: #{tpu_custom_call.1} parent=15 // pred_fallthru
          _
      $region16: #{tpu_custom_call.1} parent=5 // pred_fallthru
        _
      %p197 = scmp.le.s32.totalorder 1, %s14
      %p198 = scmp.lt.s32.totalorder %s14, 3
      %p199 = pnand %p197, %p198
      %p200 = pneg %p199
      // Predicated region
      $region25: #{tpu_custom_call.1} parent=5 // pred_check
        _
      $region26: #{tpu_custom_call.1} parent=5 // pred_check_branch
        %202 = sbr.rel (%p199) target = $region28
      $region27: #{tpu_custom_call.1} parent=5 // pred_region
        %s203 = ssub.s32 %s14, 1
        %s204 = sand.u32 %s54, 1
        %s205 = scalar_lea.sflag [#allocation3], %s204
        %s206 = sand.u32 %s54, 1
        %s207 = smul.addr %s206, 4
        %s208 = scalar_lea.vmem [#allocation2], %s207
        // Predicated region
        $region29: #{tpu_custom_call.1} parent=27 // pred_check
          %p209 = pneg %p67
        $region30: #{tpu_custom_call.1} parent=27 // pred_check_branch
          %211 = sbr.rel (%p209) target = $region32
        $region31: #{tpu_custom_call.1} parent=27 // pred_region
          %213 = dma.done %s205, 64
        $region32: #{tpu_custom_call.1} parent=27 // pred_fallthru
          _
        %s214 = sand.u32 %s88, 1
        %s215 = scalar_lea.sflag [#allocation5], %s214
        %s216 = sand.u32 %s88, 1
        %s217 = smul.addr %s216, 2
        %s218 = scalar_lea.vmem [#allocation4], %s217
        // Predicated region
        $region33: #{tpu_custom_call.1} parent=27 // pred_check
          %p219 = pneg %p101
        $region34: #{tpu_custom_call.1} parent=27 // pred_check_branch
          %221 = sbr.rel (%p219) target = $region36
        $region35: #{tpu_custom_call.1} parent=27 // pred_region
          %223 = dma.done %s215, 32
        $region36: #{tpu_custom_call.1} parent=27 // pred_fallthru
          _
        %s224 = sand.u32 %s54, 1
        %s225 = scalar_lea.sflag [#allocation3], %s224
        %s226 = sand.u32 %s54, 1
        %s227 = smul.addr %s226, 4
        %s228 = scalar_lea.vmem [#allocation2], %s227
        %p229 = pneg %p67
        %p230 = pneg %p64
        %s231 = sand.u32 %s88, 1
        %s232 = scalar_lea.sflag [#allocation5], %s231
        %s233 = sand.u32 %s88, 1
        %s234 = smul.addr %s233, 2
        %s235 = scalar_lea.vmem [#allocation4], %s234
        %p236 = pneg %p101
        %p237 = pneg %p98
        %p238 = pneg %p129
        %p239 = pneg %p126
        %p240 = scmp.lt.s32.totalorder %s24, 1
        %s241 = scalar_select %p240, %s24, 1
        %p242 = scmp.lt.s32.totalorder %s25, 0
        %s243 = scalar_select %p242, %s25, 0
        %s244 = sadd.s32 %s243, %s241
        %s245 = smul.addr %s244, 8
        %s246 = scalar_lea.vmem %s2, %s245
        %s247 = sadd.s32 %s25, %s26
        %p248 = scmp.lt.s32.totalorder %s247, 0
        %s249 = scalar_select %p248, %s247, 0
        %s250 = sadd.s32 %s25, %s26
        %p251 = scmp.lt.s32.totalorder %s250, 0
        %s252 = scalar_select %p251, %s250, 0
        %p253 = scmp.lt.s32.totalorder %s24, 1
        %s254 = scalar_select %p253, %s24, 1
        %p255 = scmp.lt.s32.totalorder %s25, 0
        %s256 = scalar_select %p255, %s25, 0
        %s257 = sadd.s32 %s256, %s254
        %s258 = smul.addr %s257, 8
        %s259 = scalar_lea.vmem %s2, %s258
        %p260 = scmp.eq.s32.totalorder %s26, 0
        // Predicated region
        $region37: #{tpu_custom_call.1} parent=27 // pred_check
          %p261 = pneg %p260
        $region38: #{tpu_custom_call.1} parent=27 // pred_check_branch
          %263 = sbr.rel (%p261) target = $region40
        $region39: #{tpu_custom_call.1} parent=27 // pred_region
          %264 = vst [vmem:[%s259] sm:$0x3f] 0.0
        $region40: #{tpu_custom_call.1} parent=27 // pred_fallthru
          _
        %v265 = vld [vmem:[%s208] sm:$0x3]
        %v266 = vld [vmem:[%s208 + $0x2] sm:$0x3]
        %v267 = vsub.f32 %v265, %v266
        %v268 = vmul.f32 %v267, 1.442695
        %v269 = vpow.pop %v268
        %v270 = vadd.f32 %v269, 1.0
        %v271 = vrcp.pop %v270
        %v272 = vsub.f32 1.0, %v271
        %v273 = vld [vmem:[%s218] sm:$0x3]
        %vm274 = vcmp.eq.s32.totalorder %v273, 1
        %v275 = vsel %vm274, 1, 0
        %v276 = vcvt.s32.f32 %v275
        %vm277 = vcmp.eq.s32.totalorder %v273, 0
        %v278 = vsel %vm277, 1, 0
        %v279 = vcvt.s32.f32 %v278
        %v280 = vmul.f32 %v271, %v276
        %v281 = vmul.f32 %v272, %v279
        %v282 = vld [vmem:[%s259] sm:$0x1]
        %vm283 = vcmask 1041408
        %v284 = vsel %vm283, %v271, 0.0
        %v285 = vrot.slane %v284, 4
        %v286 = vadd.f32 %v284, %v285
        %v287 = vrot.slane %v286, 2
        %v288 = vadd.f32 %v286, %v287
        %v289 = vrot.slane %v288, 1
        %v290 = vadd.f32 %v288, %v289
        %v291 = vadd.f32 %v282, %v290
        %292 = vst [vmem:[%s259] sm:$0x1] %v291
        %v293 = vld [vmem:[%s259 + $0x1] sm:$0x1]
        %v294 = vsel %vm283, %v272, 0.0
        %v295 = vrot.slane %v294, 4
        %v296 = vadd.f32 %v294, %v295
        %v297 = vrot.slane %v296, 2
        %v298 = vadd.f32 %v296, %v297
        %v299 = vrot.slane %v298, 1
        %v300 = vadd.f32 %v298, %v299
        %v301 = vadd.f32 %v293, %v300
        %302 = vst [vmem:[%s259 + $0x1] sm:$0x1] %v301
        %v303 = vld [vmem:[%s259 + $0x2] sm:$0x1]
        %v304 = vsel %vm283, %v276, 0.0
        %v305 = vrot.slane %v304, 4
        %v306 = vadd.f32 %v304, %v305
        %v307 = vrot.slane %v306, 2
        %v308 = vadd.f32 %v306, %v307
        %v309 = vrot.slane %v308, 1
        %v310 = vadd.f32 %v308, %v309
        %v311 = vadd.f32 %v303, %v310
        %312 = vst [vmem:[%s259 + $0x2] sm:$0x1] %v311
        %v313 = vld [vmem:[%s259 + $0x3] sm:$0x1]
        %v314 = vsel %vm283, %v279, 0.0
        %v315 = vrot.slane %v314, 4
        %v316 = vadd.f32 %v314, %v315
        %v317 = vrot.slane %v316, 2
        %v318 = vadd.f32 %v316, %v317
        %v319 = vrot.slane %v318, 1
        %v320 = vadd.f32 %v318, %v319
        %v321 = vadd.f32 %v313, %v320
        %322 = vst [vmem:[%s259 + $0x3] sm:$0x1] %v321
        %v323 = vld [vmem:[%s259 + $0x4] sm:$0x1]
        %v324 = vsel %vm283, %v280, 0.0
        %v325 = vrot.slane %v324, 4
        %v326 = vadd.f32 %v324, %v325
        %v327 = vrot.slane %v326, 2
        %v328 = vadd.f32 %v326, %v327
        %v329 = vrot.slane %v328, 1
        %v330 = vadd.f32 %v328, %v329
        %v331 = vadd.f32 %v323, %v330
        %332 = vst [vmem:[%s259 + $0x4] sm:$0x1] %v331
        %v333 = vld [vmem:[%s259 + $0x5] sm:$0x1]
        %v334 = vsel %vm283, %v281, 0.0
        %v335 = vrot.slane %v334, 4
        %v336 = vadd.f32 %v334, %v335
        %v337 = vrot.slane %v336, 2
        %v338 = vadd.f32 %v336, %v337
        %v339 = vrot.slane %v338, 1
        %v340 = vadd.f32 %v338, %v339
        %v341 = vadd.f32 %v333, %v340
        %342 = vst [vmem:[%s259 + $0x5] sm:$0x1] %v341
        %p343 = scmp.lt.s32.totalorder %s24, 1
        %s344 = scalar_select %p343, %s24, 1
        %p345 = scmp.lt.s32.totalorder %s25, 0
        %s346 = scalar_select %p345, %s25, 0
        %s347 = sadd.s32 %s346, %s344
        %s348 = smul.addr %s347, 8
        %s349 = scalar_lea.vmem %s2, %s348
        // Predicated region
        $region41: #{tpu_custom_call.1} parent=27 // pred_check
          %p350 = pneg %p126
        $region42: #{tpu_custom_call.1} parent=27 // pred_check_branch
          %352 = sbr.rel (%p350) target = $region44
        $region43: #{tpu_custom_call.1} parent=27 // pred_region
          _
        $region44: #{tpu_custom_call.1} parent=27 // pred_fallthru
          _
      $region28: #{tpu_custom_call.1} parent=5 // pred_fallthru
        _
      %p353 = scmp.le.s32.totalorder 2, %s14
      // Predicated region
      $region45: #{tpu_custom_call.1} parent=5 // pred_check
        %p354 = pneg %p353
      $region46: #{tpu_custom_call.1} parent=5 // pred_check_branch
        %356 = sbr.rel (%p354) target = $region48
      $region47: #{tpu_custom_call.1} parent=5 // pred_region
        %s357 = ssub.s32 %s14, 2
        // Predicated region
        $region49: #{tpu_custom_call.1} parent=47 // pred_check
          %p358 = pneg %p132
        $region50: #{tpu_custom_call.1} parent=47 // pred_check_branch
          %360 = sbr.rel (%p358) target = $region52
        $region51: #{tpu_custom_call.1} parent=47 // pred_region
          %p361 = scmp.lt.s32.totalorder %s27, 1
          %s362 = scalar_select %p361, %s27, 1
          %p363 = scmp.lt.s32.totalorder %s28, 0
          %s364 = scalar_select %p363, %s28, 0
          %s365 = sadd.s32 %s364, %s362
          %s366 = smul.addr %s365, 8
          %s367 = scalar_lea.vmem %s2, %s366
        $region52: #{tpu_custom_call.1} parent=47 // pred_fallthru
          _
      $region48: #{tpu_custom_call.1} parent=5 // pred_fallthru
        _
    $region6: #{tpu_custom_call.1} parent=1 // loop_footer
      %s18 = sadd.s32 1, %s14
    $region7: #{tpu_custom_call.1} parent=1 // loop_footer_branch
      %13 = sbr.rel target = $region3
    $region8: #{tpu_custom_call.1} parent=1 // loop_exit
      _
    %368 = vsyncpa [#allocation3], 1
    %s369 = scalar_lea.sflag [#allocation3], 1
    %370 = vsyncpa %s369, 1
    %371 = vsyncpa [#allocation5], 1
    %s372 = scalar_lea.sflag [#allocation5], 1
    %373 = vsyncpa %s372, 1

</llo_original>
